<compile_context>
chip_gen: v5e
topology: v5e:2x2
jax: 0.10.0
libtpu: 0.0.40
codegen_flags: <defaults>
</compile_context>

<pallas_src>
import functools

import jax
import jax.numpy as jnp
from jax.experimental import pallas as pl
from jax.experimental.pallas import tpu as pltpu

LANE = 128                 # TPU lane width; output columns padded to this
DEFAULT_BATCH_TILE = 512   # rows per grid step (mem-bound sweet spot, VMEM-safe)


def _round_up(n, m):
    return (n + m - 1) // m * m


def dqn_kernel(x_ref, w1_ref, b1_ref, w2_ref, b2_ref, o_ref):
    # x arrives in f32 (matches `x.float()`); take the MXU operand in bf16.
    xb = x_ref[...].astype(jnp.bfloat16)
    h = jnp.dot(xb, w1_ref[...], preferred_element_type=jnp.float32)
    h = jnp.maximum(h + b1_ref[...], 0.0)                       # f32 bias + ReLU
    q = jnp.dot(h.astype(w2_ref.dtype), w2_ref[...],
                preferred_element_type=jnp.float32)
    o_ref[...] = (q + b2_ref[...]).astype(o_ref.dtype)          # lane-dense store


def prepare_dqn_params(w1, b1, w2, b2):
    """One-time packing: MXU operands -> bf16, action dim zero-padded to 128."""
    hidden = w1.shape[1]
    n_actions = w2.shape[1]
    a_pad = _round_up(max(n_actions, LANE), LANE)
    w1p = w1.astype(jnp.bfloat16)
    b1p = jnp.asarray(b1, jnp.float32).reshape(1, hidden)
    w2p = jnp.zeros((hidden, a_pad), jnp.bfloat16).at[:, :n_actions].set(
        w2.astype(jnp.bfloat16))
    b2p = jnp.zeros((1, a_pad), jnp.float32).at[:, :n_actions].set(
        jnp.asarray(b2, jnp.float32).reshape(1, n_actions))
    return w1p, b1p, w2p, b2p, n_actions


@functools.partial(jax.jit, static_argnames=("n_actions", "batch_tile"))
def dqn_forward(x, w1p, b1p, w2p, b2p, *, n_actions, batch_tile=DEFAULT_BATCH_TILE):
    """x: (B, obs); w1p: (obs, H) bf16; b1p: (1, H) f32; w2p: (H, 128k) bf16; b2p: (1, 128k) f32."""
    batch, obs_size = x.shape
    hidden = w1p.shape[1]
    a_pad = w2p.shape[1]

    # Mirror `x.float()` from the PyTorch module (no-op if already f32).
    xf = jnp.asarray(x, jnp.float32)

    # Batch tiling (multiple of 8 for f32 sublane packing); pad batch to tile.
    bt = min(batch_tile, _round_up(batch, 8))
    b_pad = _round_up(batch, bt)
    if b_pad != batch:
        xf = jnp.pad(xf, ((0, b_pad - batch), (0, 0)))
    grid = (b_pad // bt,)

    cost = pl.CostEstimate(
        flops=2 * b_pad * (obs_size * hidden + hidden * a_pad),
        transcendentals=0,
        bytes_accessed=(xf.size * 4 + w1p.size * 2 + w2p.size * 2
                        + b1p.size * 4 + b2p.size * 4 + b_pad * a_pad * 4),
    )

    out = pl.pallas_call(
        dqn_kernel,
        out_shape=jax.ShapeDtypeStruct((b_pad, a_pad), jnp.float32),
        grid_spec=pltpu.PrefetchScalarGridSpec(
            num_scalar_prefetch=0,
            grid=grid,
            in_specs=[
                pl.BlockSpec((bt, obs_size), lambda i: (i, 0)),       # x batch tile
                pl.BlockSpec((obs_size, hidden), lambda i: (0, 0)),   # w1 resident
                pl.BlockSpec((1, hidden), lambda i: (0, 0)),          # b1 resident
                pl.BlockSpec((hidden, a_pad), lambda i: (0, 0)),      # w2 resident
                pl.BlockSpec((1, a_pad), lambda i: (0, 0)),           # b2 resident
            ],
            out_specs=pl.BlockSpec((bt, a_pad), lambda i: (i, 0)),
        ),
        compiler_params=pltpu.CompilerParams(
            dimension_semantics=("parallel",),  # shards batch tiles across v7x's 2 TCs
        ),
        cost_estimate=cost,
    )(xf, w1p, b1p, w2p, b2p)

    # Slice padding off BEFORE any downstream argmax over Q-values.
    return out[:batch, :n_actions]


def init_dqn_params(key, obs_size, n_actions, hidden_size=128):
    """Deterministic synthetic init matching nn.Linear shapes (stored transposed)."""
    k1, k2, k3, k4 = jax.random.split(key, 4)
    # PyTorch nn.Linear default init: U(-1/sqrt(fan_in), 1/sqrt(fan_in))
    lim1 = 1.0 / jnp.sqrt(jnp.float32(obs_size))
    lim2 = 1.0 / jnp.sqrt(jnp.float32(hidden_size))
    w1 = jax.random.uniform(k1, (obs_size, hidden_size), jnp.float32, -lim1, lim1)
    b1 = jax.random.uniform(k2, (1, hidden_size), jnp.float32, -lim1, lim1)
    w2 = jax.random.uniform(k3, (hidden_size, n_actions), jnp.float32, -lim2, lim2)
    b2 = jax.random.uniform(k4, (1, n_actions), jnp.float32, -lim2, lim2)
    return w1, b1, w2, b2


if __name__ == "__main__":
    obs_size, n_actions, hidden_size = 16, 4, 128
    batch = 8

    key = jax.random.PRNGKey(0)
    kx, kp = jax.random.split(key)
    x = jax.random.normal(kx, (batch, obs_size), jnp.float32)
    w1, b1, w2, b2 = init_dqn_params(kp, obs_size, n_actions, hidden_size)

    w1p, b1p, w2p, b2p, na = prepare_dqn_params(w1, b1, w2, b2)
    out = dqn_forward(x, w1p, b1p, w2p, b2p, n_actions=na)
    out = jax.block_until_ready(out)
    assert out.shape == (batch, n_actions)

    # Reference with the same bf16 MXU operands / f32 accumulation as the kernel.
    xb = x.astype(jnp.bfloat16)
    h_ref = jnp.maximum(
        jnp.dot(xb, w1.astype(jnp.bfloat16), preferred_element_type=jnp.float32) + b1,
        0.0)
    ref_bf16 = jnp.dot(h_ref.astype(jnp.bfloat16), w2.astype(jnp.bfloat16),
                       preferred_element_type=jnp.float32) + b2
    assert jnp.allclose(out, ref_bf16, atol=1e-2, rtol=1e-2), "mismatch vs bf16 reference"

    # Coarse check vs the full-f32 PyTorch-equivalent forward (bf16 error budget).
    ref_f32 = jnp.maximum(x @ w1 + b1, 0.0) @ w2 + b2
    assert jnp.allclose(out, ref_f32, atol=0.1, rtol=0.1), "mismatch vs f32 reference"

    print("KERNEL_OK")
</pallas_src>

<mosaic_0001>
module attributes {stable_mosaic.version = 11 : i64} {
  func.func @dqn_kernel(%arg0: i32, %arg1: memref<8x16xf32, #tpu.memory_space<vmem>>, %arg2: memref<16x128xbf16, #tpu.memory_space<vmem>>, %arg3: memref<1x128xf32, #tpu.memory_space<vmem>>, %arg4: memref<128x128xbf16, #tpu.memory_space<vmem>>, %arg5: memref<1x128xf32, #tpu.memory_space<vmem>>, %arg6: memref<8x128xf32, #tpu.memory_space<vmem>>) attributes {dimension_semantics = [#tpu.dimension_semantics<parallel>], iteration_bounds = array<i64: 1>, scalar_prefetch = 0 : i64, scratch_operands = 0 : i64, tpu.core_type = #tpu.core_type<tc>, window_params = [{transform_indices = @transform_0, window_bounds = array<i64: 8, 16>}, {pipeline_mode = #tpu.pipeline_mode<synchronous>, transform_indices = @transform_1, window_bounds = array<i64: 16, 128>}, {pipeline_mode = #tpu.pipeline_mode<synchronous>, transform_indices = @transform_2, window_bounds = array<i64: 1, 128>}, {pipeline_mode = #tpu.pipeline_mode<synchronous>, transform_indices = @transform_3, window_bounds = array<i64: 128, 128>}, {pipeline_mode = #tpu.pipeline_mode<synchronous>, transform_indices = @transform_4, window_bounds = array<i64: 1, 128>}, {transform_indices = @transform_5, window_bounds = array<i64: 8, 128>}]} {
    %c0 = arith.constant 0 : index
    %c0_0 = arith.constant 0 : index
    %0 = vector.load %arg1[%c0, %c0_0] : memref<8x16xf32, #tpu.memory_space<vmem>>, vector<8x16xf32>
    %1 = arith.truncf %0 : vector<8x16xf32> to vector<8x16xbf16>
    %c0_1 = arith.constant 0 : index
    %c0_2 = arith.constant 0 : index
    %2 = vector.load %arg2[%c0_1, %c0_2] : memref<16x128xbf16, #tpu.memory_space<vmem>>, vector<16x128xbf16>
    %cst = arith.constant dense<0.000000e+00> : vector<8x128xf32>
    %3 = tpu.matmul %1, %2, %cst {dimension_numbers = #tpu.dot_dimension_numbers<[1], [0], [0], [1], [0, 0, 1, 1], [], []>} : vector<8x16xbf16>, vector<16x128xbf16>, vector<8x128xf32> -> vector<8x128xf32>
    %c0_3 = arith.constant 0 : index
    %c0_4 = arith.constant 0 : index
    %4 = vector.load %arg3[%c0_3, %c0_4] : memref<1x128xf32, #tpu.memory_space<vmem>>, vector<1x128xf32>
    %5 = vector.broadcast %4 : vector<1x128xf32> to vector<8x128xf32>
    %6 = arith.addf %3, %5 : vector<8x128xf32>
    %cst_5 = arith.constant 0.000000e+00 : f32
    %7 = vector.broadcast %cst_5 : f32 to vector<8x128xf32>
    %8 = arith.maximumf %6, %7 : vector<8x128xf32>
    %9 = arith.truncf %8 : vector<8x128xf32> to vector<8x128xbf16>
    %c0_6 = arith.constant 0 : index
    %c0_7 = arith.constant 0 : index
    %10 = vector.load %arg4[%c0_6, %c0_7] : memref<128x128xbf16, #tpu.memory_space<vmem>>, vector<128x128xbf16>
    %cst_8 = arith.constant dense<0.000000e+00> : vector<8x128xf32>
    %11 = tpu.matmul %9, %10, %cst_8 {dimension_numbers = #tpu.dot_dimension_numbers<[1], [0], [0], [1], [0, 0, 1, 1], [], []>} : vector<8x128xbf16>, vector<128x128xbf16>, vector<8x128xf32> -> vector<8x128xf32>
    %c0_9 = arith.constant 0 : index
    %c0_10 = arith.constant 0 : index
    %12 = vector.load %arg5[%c0_9, %c0_10] : memref<1x128xf32, #tpu.memory_space<vmem>>, vector<1x128xf32>
    %13 = vector.broadcast %12 : vector<1x128xf32> to vector<8x128xf32>
    %14 = arith.addf %11, %13 : vector<8x128xf32>
    %c0_11 = arith.constant 0 : index
    %c0_12 = arith.constant 0 : index
    %15 = vector.load %arg6[%c0_11, %c0_12] : memref<8x128xf32, #tpu.memory_space<vmem>>, vector<8x128xf32>
    tpu.vector_store %arg6[%c0_11, %c0_12], %14 {strides = array<i32>} : memref<8x128xf32, #tpu.memory_space<vmem>>, vector<8x128xf32>,
    return
  }
  func.func @transform_0(%arg0: i32) -> (i32, i32) {
    %c0_i32 = arith.constant 0 : i32
    %c0_i32_0 = arith.constant 0 : i32
    return %arg0, %c0_i32 : i32, i32
  }
  func.func @transform_1(%arg0: i32) -> (i32, i32) {
    %c0_i32 = arith.constant 0 : i32
    %c0_i32_0 = arith.constant 0 : i32
    %c0_i32_1 = arith.constant 0 : i32
    return %c0_i32, %c0_i32_0 : i32, i32
  }
  func.func @transform_2(%arg0: i32) -> (i32, i32) {
    %c0_i32 = arith.constant 0 : i32
    %c0_i32_0 = arith.constant 0 : i32
    %c0_i32_1 = arith.constant 0 : i32
    return %c0_i32, %c0_i32_0 : i32, i32
  }
  func.func @transform_3(%arg0: i32) -> (i32, i32) {
    %c0_i32 = arith.constant 0 : i32
    %c0_i32_0 = arith.constant 0 : i32
    %c0_i32_1 = arith.constant 0 : i32
    return %c0_i32, %c0_i32_0 : i32, i32
  }
  func.func @transform_4(%arg0: i32) -> (i32, i32) {
    %c0_i32 = arith.constant 0 : i32
    %c0_i32_0 = arith.constant 0 : i32
    %c0_i32_1 = arith.constant 0 : i32
    return %c0_i32, %c0_i32_0 : i32, i32
  }
  func.func @transform_5(%arg0: i32) -> (i32, i32) {
    %c0_i32 = arith.constant 0 : i32
    %c0_i32_0 = arith.constant 0 : i32
    return %arg0, %c0_i32 : i32, i32
  }
}

</mosaic_0001>

<llo_original>
// kernel: dqn_forward.1
$region0: #{dqn_forward.1}
  #allocation0 [shape = 'u32[]', space=smem, size = 0x4, offset = 0x4, fixed_abs, tag = 'smem constant byte address 0x4 - core index']
  #allocation1 [shape = 'u32[72,128]{1,0:T(1,128)}', space=vmem, size = 0x9000, scoped, tag = 'internal scratch']
  %s0 = inlined_call_operand.hbm [shape: f32[8,16], index: 0, kind: input, shape index: {}]
  %s1 = inlined_call_operand.hbm [shape: bf16[16,128], index: 1, kind: input, shape index: {}]
  %s2 = inlined_call_operand.vmem [shape: f32[1,128], index: 2, kind: input, shape index: {}]
  %s3 = inlined_call_operand.hbm [shape: bf16[128,128], index: 3, kind: input, shape index: {}]
  %s4 = inlined_call_operand.vmem [shape: f32[1,128], index: 4, kind: input, shape index: {}]
  %s5 = inlined_call_operand.vmem [shape: f32[8,128], index: 5, kind: output, shape index: {}]
  %s6 = sld [smem:[#allocation0]]
  $region42: #{dqn_forward.1} parent=0
    _
  %s8 = ssub.s32 1, %s6
  %s9 = scalar_select 0, %s8, %s6
  $region1: #{dqn_forward.1} parent=0
    #allocation2 [shape = 'u8[4096]{0}', space=vmem, size = 0x1000, scoped, tag = 'input window, operand 0, single buffered']
    #allocation3 [shape = 's32[1]{0}', space=sflag, size = 0x4, scoped, tag = 'scoped memory for dqn_forward.1']
    #allocation4 [shape = 'u8[4096]{0}', space=vmem, size = 0x1000, scoped, tag = 'input window, operand 1, single buffered']
    #allocation5 [shape = 's32[1]{0}', space=sflag, size = 0x4, scoped, tag = 'scoped memory for dqn_forward.1']
    #allocation6 [shape = 'u8[32768]{0}', space=vmem, size = 0x8000, scoped, tag = 'input window, operand 3, single buffered']
    %10 = vsyncpa [#allocation3], 0
    %11 = vsyncpa [#allocation5], 0
    // Predicated region
    $region2: #{dqn_forward.1} parent=1 // pred_check
      _
    $region3: #{dqn_forward.1} parent=1 // pred_check_branch
      %13 = sbr.rel (0) target = $region5
    $region4: #{dqn_forward.1} parent=1 // pred_region
      %15 = vsyncadd [#allocation3], 0
      %s17 = sshll.u32 %s0, 4
      %s18 = int_to_ptr.hbm [resolvable:$true] %s17
      %s19 = sshll.u32 [#allocation2], 4
      %s20 = int_to_ptr.vmem [resolvable:$true] %s19
      %22 = dma.hbm_to_vmem [thread:$0]  %s18, 128, %s20, [#allocation3]
    $region5: #{dqn_forward.1} parent=1 // pred_fallthru
      _
    // Predicated region
    $region6: #{dqn_forward.1} parent=1 // pred_check
      _
    $region7: #{dqn_forward.1} parent=1 // pred_check_branch
      %24 = sbr.rel (0) target = $region9
    $region8: #{dqn_forward.1} parent=1 // pred_region
      %26 = vsyncadd [#allocation5], 0
      %s27 = sshll.u32 %s1, 4
      %s28 = int_to_ptr.hbm [resolvable:$true] %s27
      %s29 = sshll.u32 [#allocation4], 4
      %s30 = int_to_ptr.vmem [resolvable:$true] %s29
      %35 = dma.hbm_to_vmem [thread:$0]  %s28, 128, %s30, [#allocation5], 64, 64, 4
    $region9: #{dqn_forward.1} parent=1 // pred_fallthru
      _
    // Predicated region
    $region10: #{dqn_forward.1} parent=1 // pred_check
      _
    $region11: #{dqn_forward.1} parent=1 // pred_check_branch
      %37 = sbr.rel (0) target = $region13
    $region12: #{dqn_forward.1} parent=1 // pred_region
      _
    $region13: #{dqn_forward.1} parent=1 // pred_fallthru
      _
    // Predicated region
    $region14: #{dqn_forward.1} parent=1 // pred_check
      _
    $region15: #{dqn_forward.1} parent=1 // pred_check_branch
      %39 = sbr.rel (0) target = $region17
    $region16: #{dqn_forward.1} parent=1 // pred_region
      %41 = vsyncadd [#allocation5], 0
      %s42 = sshll.u32 %s3, 4
      %s43 = int_to_ptr.hbm [resolvable:$true] %s42
      %s44 = sshll.u32 [#allocation6], 4
      %s45 = int_to_ptr.vmem [resolvable:$true] %s44
      %50 = dma.hbm_to_vmem [thread:$0]  %s43, 1024, %s45, [#allocation5], 64, 64, 4
    $region17: #{dqn_forward.1} parent=1 // pred_fallthru
      _
    // Predicated region
    $region18: #{dqn_forward.1} parent=1 // pred_check
      _
    $region19: #{dqn_forward.1} parent=1 // pred_check_branch
      %52 = sbr.rel (0) target = $region21
    $region20: #{dqn_forward.1} parent=1 // pred_region
      _
    $region21: #{dqn_forward.1} parent=1 // pred_fallthru
      _
    // Predicated region
    $region22: #{dqn_forward.1} parent=1 // pred_check
      _
    $region23: #{dqn_forward.1} parent=1 // pred_check_branch
      %54 = sbr.rel (0) target = $region25
    $region24: #{dqn_forward.1} parent=1 // pred_region
      %56 = dma.done [#allocation3], 128
    $region25: #{dqn_forward.1} parent=1 // pred_fallthru
      _
    // Predicated region
    $region26: #{dqn_forward.1} parent=1 // pred_check
      _
    $region27: #{dqn_forward.1} parent=1 // pred_check_branch
      %58 = sbr.rel (0) target = $region29
    $region28: #{dqn_forward.1} parent=1 // pred_region
      %60 = dma.done [#allocation5], 128
    $region29: #{dqn_forward.1} parent=1 // pred_fallthru
      _
    // Predicated region
    $region30: #{dqn_forward.1} parent=1 // pred_check
      _
    $region31: #{dqn_forward.1} parent=1 // pred_check_branch
      %62 = sbr.rel (0) target = $region33
    $region32: #{dqn_forward.1} parent=1 // pred_region
      %64 = dma.done [#allocation5], 1024
    $region33: #{dqn_forward.1} parent=1 // pred_fallthru
      _
    %v66 = vld [vmem:[#allocation2] sm:$0xff]
    %v67 = vpack.c.bf16 %v66, %v66
    %v68 = vld [vmem:[#allocation4] sm:$0xf]
    %v69 = vld [vmem:[#allocation4 + $0x4] sm:$0xf]
    %v70 = vld [vmem:[%s2] sm:$0x1]
    %v72 = vperm.slane %v70, 0
    %v76 = vunpack.c.l.b16 %v68
    %v77 = vunpack.c.l.b16 %v69
    %v78 = vpack.c.b16 %v77, %v76
    %vm80 = vcmask 130048
    %v82 = vsel %vm80, %v67, 0
    %84 = vmatpush.bf16.msra.mxu0 0
    %85 = vmatpush.bf16.msra.mxu0 0
    %86 = vmatpush.bf16.msra.mxu0 0
    %87 = vmatpush.bf16.msra.mxu0 0
    %88 = vmatpush.bf16.msra.mxu0 0
    %89 = vmatpush.bf16.msra.mxu0 0
    %90 = vmatpush.bf16.msra.mxu0 0
    %91 = vmatpush.bf16.msra.mxu0 %v78
    %92 = vmatmul.bf16.gmra.mxu0 %v82
    %v93 = vpop.f32.mrf.mxu0
    %v94 = vadd.f32 %v72, %v93
    %v95 = vpop.f32.mrf.mxu0
    %96 = vdwg.mxu0
    %v97 = vmax.f32 %v94, 0.0
    %v98 = vpack.c.bf16 %v97, %v97
    %v99 = vld [vmem:[#allocation6] sm:$0xf]
    %v100 = vld [vmem:[#allocation6 + $0x4] sm:$0xf]
    %v101 = vld [vmem:[#allocation6 + $0x8] sm:$0xf]
    %v102 = vld [vmem:[#allocation6 + $0xc] sm:$0xf]
    %v103 = vld [vmem:[#allocation6 + $0x10] sm:$0xf]
    %v104 = vld [vmem:[#allocation6 + $0x14] sm:$0xf]
    %v105 = vld [vmem:[#allocation6 + $0x18] sm:$0xf]
    %v106 = vld [vmem:[#allocation6 + $0x1c] sm:$0xf]
    %v107 = vld [vmem:[#allocation6 + $0x20] sm:$0xf]
    %v108 = vld [vmem:[#allocation6 + $0x24] sm:$0xf]
    %v109 = vld [vmem:[#allocation6 + $0x28] sm:$0xf]
    %v110 = vld [vmem:[#allocation6 + $0x2c] sm:$0xf]
    %v111 = vld [vmem:[#allocation6 + $0x30] sm:$0xf]
    %v112 = vld [vmem:[#allocation6 + $0x34] sm:$0xf]
    %v113 = vld [vmem:[#allocation6 + $0x38] sm:$0xf]
    %v114 = vld [vmem:[#allocation6 + $0x3c] sm:$0xf]
    %v115 = vld [vmem:[%s4] sm:$0x1]
    %v117 = vperm.slane %v115, 0
    %v135 = vunpack.c.l.b16 %v99
    %v136 = vunpack.c.l.b16 %v100
    %v137 = vunpack.c.l.b16 %v101
    %v138 = vunpack.c.l.b16 %v102
    %v139 = vunpack.c.l.b16 %v103
    %v140 = vunpack.c.l.b16 %v104
    %v141 = vunpack.c.l.b16 %v105
    %v142 = vunpack.c.l.b16 %v106
    %v143 = vunpack.c.l.b16 %v107
    %v144 = vunpack.c.l.b16 %v108
    %v145 = vunpack.c.l.b16 %v109
    %v146 = vunpack.c.l.b16 %v110
    %v147 = vunpack.c.l.b16 %v111
    %v148 = vunpack.c.l.b16 %v112
    %v149 = vunpack.c.l.b16 %v113
    %v150 = vunpack.c.l.b16 %v114
    %v151 = vpack.c.b16 %v136, %v135
    %v152 = vpack.c.b16 %v138, %v137
    %v153 = vpack.c.b16 %v140, %v139
    %v154 = vpack.c.b16 %v142, %v141
    %v155 = vpack.c.b16 %v144, %v143
    %v156 = vpack.c.b16 %v146, %v145
    %v157 = vpack.c.b16 %v148, %v147
    %v158 = vpack.c.b16 %v150, %v149
    %167 = vmatpush.bf16.msra.mxu0 %v158
    %168 = vmatpush.bf16.msra.mxu0 %v157
    %169 = vmatpush.bf16.msra.mxu0 %v156
    %170 = vmatpush.bf16.msra.mxu0 %v155
    %171 = vmatpush.bf16.msra.mxu0 %v154
    %172 = vmatpush.bf16.msra.mxu0 %v153
    %173 = vmatpush.bf16.msra.mxu0 %v152
    %174 = vmatpush.bf16.msra.mxu0 %v151
    %175 = vmatmul.bf16.gmra.mxu0 %v98
    %v176 = vpop.f32.mrf.mxu0
    %v177 = vadd.f32 %v117, %v176
    %v178 = vpop.f32.mrf.mxu0
    %179 = vdwg.mxu0
    %180 = vst [vmem:[%s5] sm:$0xff] %v177
    // Predicated region
    $region34: #{dqn_forward.1} parent=1 // pred_check
      _
    $region35: #{dqn_forward.1} parent=1 // pred_check_branch
      %182 = sbr.rel (0) target = $region37
    $region36: #{dqn_forward.1} parent=1 // pred_region
      _
    $region37: #{dqn_forward.1} parent=1 // pred_fallthru
      _
    // Predicated region
    $region38: #{dqn_forward.1} parent=1 // pred_check
      _
    $region39: #{dqn_forward.1} parent=1 // pred_check_branch
      %184 = sbr.rel (0) target = $region41
    $region40: #{dqn_forward.1} parent=1 // pred_region
      _
    $region41: #{dqn_forward.1} parent=1 // pred_fallthru
      _
    %185 = vsyncpa [#allocation3], 1
    %186 = vsyncpa [#allocation5], 1

</llo_original>
